<compile_context>
chip_gen: v6e
topology: v6e:2x2x1
jax: 0.10.0
libtpu: 0.0.40
codegen_flags: <defaults>
</compile_context>

<pallas_src>
import functools
import math

import jax
import jax.numpy as jnp
from jax.experimental import pallas as pl
from jax.experimental.pallas import tpu as pltpu

EPS = 1e-5  # nn.LayerNorm default


def _round_up(x, m):
    return ((x + m - 1) // m) * m


def _cdiv(a, b):
    return -(-a // b)


def _vmem_budget_bytes():
    """Generation-aware scoped-VMEM budget for this kernel."""
    try:
        phys = int(pltpu.get_tpu_info().vmem_capacity_bytes)
    except Exception:
        phys = 64 << 20                      # conservative: v7x per-TC size
    if phys >= (100 << 20):                  # v5e / v6e: 128 MiB physical
        return 100 << 20
    return max(32 << 20, phys - (12 << 20))  # v7x: ~52 MiB, leave headroom


# ----------------------------------------------------------------------------
# Kernels
# ----------------------------------------------------------------------------
def _ln_linear_resident_kernel(x_ref, w_ref, b_ref, o_ref, *, d_true, mask_lanes):
    """out = normalize(x) @ W' + b' with W' fully VMEM-resident (1-D grid).

    gamma/beta are folded into W'/b' by the wrapper.  x is zero-padded in the
    lane dimension, so the mean reduction needs no mask; only the centered
    value is masked (and only when D < Dp, decided statically).
    """
    x = x_ref[...].astype(jnp.float32)                                # (TR, Dp)
    inv_d = 1.0 / d_true
    mean = jnp.sum(x, axis=-1, keepdims=True) * inv_d                 # pads are 0
    xc = x - mean
    if mask_lanes:                                                    # static
        lane = jax.lax.broadcasted_iota(jnp.int32, xc.shape, dimension=1)
        xc = jnp.where(lane < d_true, xc, 0.0)
    var = jnp.sum(xc * xc, axis=-1, keepdims=True) * inv_d            # biased var
    norm = (xc * jax.lax.rsqrt(var + EPS)).astype(w_ref.dtype)        # bf16 LHS
    acc = jnp.dot(norm, w_ref[...], preferred_element_type=jnp.float32)
    o_ref[...] = (acc + b_ref[...]).astype(o_ref.dtype)


def _ln_linear_tiled_kernel(x_ref, w_ref, b_ref, o_ref, norm_ref, *,
                            d_true, mask_lanes):
    """2-D grid (row tile i, output-column tile j).  LayerNorm is computed
    once per row tile (j == 0) into a VMEM scratch (in matmul dtype) and
    reused for every output-column tile."""
    j = pl.program_id(1)

    @pl.when(j == 0)
    def _():
        x = x_ref[...].astype(jnp.float32)                            # (TR, Dp)
        inv_d = 1.0 / d_true
        mean = jnp.sum(x, axis=-1, keepdims=True) * inv_d
        xc = x - mean
        if mask_lanes:                                                # static
            lane = jax.lax.broadcasted_iota(jnp.int32, xc.shape, dimension=1)
            xc = jnp.where(lane < d_true, xc, 0.0)
        var = jnp.sum(xc * xc, axis=-1, keepdims=True) * inv_d
        norm_ref[...] = (xc * jax.lax.rsqrt(var + EPS)).astype(norm_ref.dtype)

    acc = jnp.dot(norm_ref[...], w_ref[...], preferred_element_type=jnp.float32)
    o_ref[...] = (acc + b_ref[...]).astype(o_ref.dtype)


# ----------------------------------------------------------------------------
# Wrapper
# ----------------------------------------------------------------------------
def layer_normalize(x, gamma, beta, w, b, *,
                    tile_rows=512, matmul_dtype=jnp.bfloat16,
                    x_stream_dtype=None, force_tiled=False):
    """Pallas TPU LayerNormalize(dim, fn=Linear(dim, dim_out)).

    x:     (B, S, D) activations.
    gamma: (D,) LayerNorm weight.   beta: (D,) LayerNorm bias.
    w:     (D, D_out) Linear weight pre-transposed to (in, out): y = LN(x) @ w + b.
    b:     (D_out,) Linear bias.
    Returns (B, S, D_out) in x.dtype.
    """
    B, S, D = x.shape
    D_out = w.shape[1]
    rows = B * S

    # ---- fold the LayerNorm affine into the linear layer (exact, f32) -------
    #   LN(x) @ W + b = norm(x) @ (gamma[:, None] * W) + (beta @ W + b)
    w_f32 = w.astype(jnp.float32)
    w_folded = gamma.astype(jnp.float32)[:, None] * w_f32             # (D, D_out)
    b_folded = beta.astype(jnp.float32) @ w_f32 + b.astype(jnp.float32)

    Dp = _round_up(D, 128)
    mask_lanes = (Dp != D)

    # ---- adaptive row tile: bound padding waste, feed both v7x TCs ----------
    min_tiles = 2 if rows >= 32 else 1
    n_tiles = max(min_tiles, _cdiv(rows, tile_rows))
    tr = min(_round_up(tile_rows, 16), _round_up(_cdiv(rows, n_tiles), 16))

    budget = _vmem_budget_bytes()
    itm = jnp.dtype(matmul_dtype).itemsize
    xbytes = jnp.dtype(x_stream_dtype).itemsize if x_stream_dtype is not None \
        else jnp.dtype(x.dtype).itemsize
    obytes = jnp.dtype(x.dtype).itemsize

    # ---- path selection: W'-resident (preferred) vs column-tiled ------------
    Dp_out_r = _round_up(D_out, 128)
    resident_need = (2 * tr * Dp * xbytes          # x row tiles (double-buffered)
                     + 2 * tr * Dp_out_r * obytes  # output tiles
                     + 2 * Dp * Dp_out_r * itm     # resident W' (fetched once)
                     + 2 * Dp_out_r * 4)           # bias
    use_resident = (not force_tiled) and resident_need <= budget - (4 << 20)

    if use_resident:
        Dp_out = Dp_out_r
        tn = Dp_out
        needed = resident_need
    else:
        # Column-tiled W: D_out padded to a 256 multiple, tn in {512, 256}.
        Dp_out = _round_up(D_out, 256)

        def tiled_need(tr_, tn_):
            return (2 * tr_ * Dp * xbytes + 2 * tr_ * tn_ * obytes
                    + 2 * Dp * tn_ * itm + 2 * tn_ * 4 + tr_ * Dp * itm)

        tn = 512 if (Dp_out >= 512 and Dp_out % 512 == 0) else 256
        if tn == 512 and tiled_need(tr, tn) > budget - (2 << 20):
            tn = 256
        while tiled_need(tr, tn) > budget - (2 << 20) and tr > 128:
            tr = max(128, _round_up(tr // 2, 16))
        needed = tiled_need(tr, tn)

    rows_p = _cdiv(rows, tr) * tr
    n_row_tiles = rows_p // tr

    # ---- pad operands (lane-dense, multiples of 128 / 256) ------------------
    x2 = jnp.pad(x.reshape(rows, D), ((0, rows_p - rows), (0, Dp - D)))
    if x_stream_dtype is not None:
        x2 = x2.astype(x_stream_dtype)
    w_p = jnp.pad(w_folded, ((0, Dp - D), (0, Dp_out - D_out))).astype(matmul_dtype)
    b_p = jnp.pad(b_folded, (0, Dp_out - D_out)).reshape(1, Dp_out)

    # ---- cost estimate & VMEM limit ------------------------------------------
    w_reads = 1 if use_resident else n_row_tiles
    flops = 2 * rows_p * Dp * Dp_out + 6 * rows_p * Dp
    bytes_accessed = (x2.size * xbytes + w_reads * w_p.size * itm
                      + rows_p * Dp_out * obytes + w_reads * b_p.size * 4)
    cost = pl.CostEstimate(flops=int(flops), transcendentals=int(rows_p),
                           bytes_accessed=int(bytes_accessed))
    vmem_limit = int(min(budget, max(needed + (8 << 20), 32 << 20)))

    if use_resident:
        kernel = functools.partial(_ln_linear_resident_kernel,
                                   d_true=D, mask_lanes=mask_lanes)
        out_p = pl.pallas_call(
            kernel,
            out_shape=jax.ShapeDtypeStruct((rows_p, Dp_out), x.dtype),
            grid_spec=pltpu.PrefetchScalarGridSpec(
                num_scalar_prefetch=0,
                grid=(n_row_tiles,),
                in_specs=[
                    pl.BlockSpec((tr, Dp), lambda i: (i, 0)),        # x row tile
                    pl.BlockSpec((Dp, Dp_out), lambda i: (0, 0)),    # resident W'
                    pl.BlockSpec((1, Dp_out), lambda i: (0, 0)),     # resident b'
                ],
                out_specs=pl.BlockSpec((tr, Dp_out), lambda i: (i, 0)),
            ),
            compiler_params=pltpu.CompilerParams(
                dimension_semantics=("parallel",),
                vmem_limit_bytes=vmem_limit,
            ),
            cost_estimate=cost,
        )(x2, w_p, b_p)
    else:
        kernel = functools.partial(_ln_linear_tiled_kernel,
                                   d_true=D, mask_lanes=mask_lanes)
        out_p = pl.pallas_call(
            kernel,
            out_shape=jax.ShapeDtypeStruct((rows_p, Dp_out), x.dtype),
            grid_spec=pltpu.PrefetchScalarGridSpec(
                num_scalar_prefetch=0,
                grid=(n_row_tiles, Dp_out // tn),
                in_specs=[
                    pl.BlockSpec((tr, Dp), lambda i, j: (i, 0)),     # x row tile
                    pl.BlockSpec((Dp, tn), lambda i, j: (0, j)),     # W' column tile
                    pl.BlockSpec((1, tn), lambda i, j: (0, j)),      # b' column tile
                ],
                out_specs=pl.BlockSpec((tr, tn), lambda i, j: (i, j)),
                scratch_shapes=[pltpu.VMEM((tr, Dp), matmul_dtype)],  # LN result
            ),
            compiler_params=pltpu.CompilerParams(
                dimension_semantics=("parallel", "arbitrary"),
                vmem_limit_bytes=vmem_limit,
            ),
            cost_estimate=cost,
        )(x2, w_p, b_p)

    return out_p[:rows, :D_out].reshape(B, S, D_out)


# ----------------------------------------------------------------------------
# Reference & self-test
# ----------------------------------------------------------------------------
def _reference(x, gamma, beta, w, b):
    x = x.astype(jnp.float32)
    mean = jnp.mean(x, axis=-1, keepdims=True)
    var = jnp.mean((x - mean) ** 2, axis=-1, keepdims=True)
    y = (x - mean) / jnp.sqrt(var + EPS) * gamma + beta
    return y @ w + b


def _make_case(key, B, S, D):
    kx, kw, kb, kg, kbt = jax.random.split(key, 5)
    x = jax.random.normal(kx, (B, S, D), dtype=jnp.float32)
    gamma = 1.0 + 0.1 * jax.random.normal(kg, (D,), dtype=jnp.float32)
    beta = 0.1 * jax.random.normal(kbt, (D,), dtype=jnp.float32)
    # fn = Linear(D, D), stored pre-transposed as (in, out).
    w = jax.random.normal(kw, (D, D), dtype=jnp.float32) / math.sqrt(D)
    b = 0.01 * jax.random.normal(kb, (D,), dtype=jnp.float32)
    return x, gamma, beta, w, b


def _check(out, ref):
    err = float(jnp.max(jnp.abs(out - ref)))
    assert out.shape == ref.shape
    assert jnp.allclose(out, ref, atol=5e-2, rtol=5e-2), ("mismatch", err)


if __name__ == "__main__":
    key = jax.random.PRNGKey(0)
    k1, k2 = jax.random.split(key)

    # Shape consistent with the module: batch=2, seq=8, hidden=32.
    x, gamma, beta, w, b = _make_case(k1, 2, 8, 32)
    out = jax.block_until_ready(layer_normalize(x, gamma, beta, w, b))
    _check(out, _reference(x, gamma, beta, w, b))

    # Ragged shape: row padding + lane masking (D=96 -> 128 lanes), 2 row tiles.
    x, gamma, beta, w, b = _make_case(k2, 2, 100, 96)
    out = jax.block_until_ready(layer_normalize(x, gamma, beta, w, b))
    ref = _reference(x, gamma, beta, w, b)
    _check(out, ref)

    # Same case through the column-tiled fallback path (large-D code path).
    out = jax.block_until_ready(
        layer_normalize(x, gamma, beta, w, b, force_tiled=True))
    _check(out, ref)

    print("KERNEL_OK")
</pallas_src>

<mosaic_0001>
module attributes {stable_mosaic.version = 11 : i64} {
  func.func @_ln_linear_resident_kernel(%arg0: i32, %arg1: memref<16x128xf32, #tpu.memory_space<vmem>>, %arg2: memref<128x128xbf16, #tpu.memory_space<vmem>>, %arg3: memref<1x128xf32, #tpu.memory_space<vmem>>, %arg4: memref<16x128xf32, #tpu.memory_space<vmem>>) attributes {dimension_semantics = [#tpu.dimension_semantics<parallel>], iteration_bounds = array<i64: 1>, scalar_prefetch = 0 : i64, scratch_operands = 0 : i64, tpu.core_type = #tpu.core_type<tc>, window_params = [{transform_indices = @transform_0, window_bounds = array<i64: 16, 128>}, {pipeline_mode = #tpu.pipeline_mode<synchronous>, transform_indices = @transform_1, window_bounds = array<i64: 128, 128>}, {pipeline_mode = #tpu.pipeline_mode<synchronous>, transform_indices = @transform_2, window_bounds = array<i64: 1, 128>}, {transform_indices = @transform_3, window_bounds = array<i64: 16, 128>}]} {
    %c0 = arith.constant 0 : index
    %c0_0 = arith.constant 0 : index
    %0 = vector.load %arg1[%c0, %c0_0] : memref<16x128xf32, #tpu.memory_space<vmem>>, vector<16x128xf32>
    %cst = arith.constant dense<0.000000e+00> : vector<16xf32>
    %1 = vector.multi_reduction <add>, %0, %cst [1] : vector<16x128xf32> to vector<16xf32>
    %2 = vector.shape_cast %1 : vector<16xf32> to vector<16x1xf32>
    %cst_1 = arith.constant 3.125000e-02 : f32
    %3 = vector.broadcast %cst_1 : f32 to vector<16x1xf32>
    %4 = arith.mulf %2, %3 : vector<16x1xf32>
    %5 = vector.broadcast %4 : vector<16x1xf32> to vector<16x128xf32>
    %6 = arith.subf %0, %5 : vector<16x128xf32>
    %7 = tpu.iota {dimensions = array<i32: 1>} : vector<16x128xi32>
    %c32_i32 = arith.constant 32 : i32
    %8 = vector.broadcast %c32_i32 : i32 to vector<16x128xi32>
    %9 = arith.cmpi slt, %7, %8 : vector<16x128xi32>
    %cst_2 = arith.constant 0.000000e+00 : f32
    %10 = vector.broadcast %cst_2 : f32 to vector<16x128xf32>
    %11 = arith.select %9, %6, %10 : vector<16x128xi1>, vector<16x128xf32>
    %12 = arith.mulf %11, %11 : vector<16x128xf32>
    %cst_3 = arith.constant dense<0.000000e+00> : vector<16xf32>
    %13 = vector.multi_reduction <add>, %12, %cst_3 [1] : vector<16x128xf32> to vector<16xf32>
    %14 = vector.shape_cast %13 : vector<16xf32> to vector<16x1xf32>
    %cst_4 = arith.constant 3.125000e-02 : f32
    %15 = vector.broadcast %cst_4 : f32 to vector<16x1xf32>
    %16 = arith.mulf %14, %15 : vector<16x1xf32>
    %cst_5 = arith.constant 9.99999974E-6 : f32
    %17 = vector.broadcast %cst_5 : f32 to vector<16x1xf32>
    %18 = arith.addf %16, %17 : vector<16x1xf32>
    %19 = math.rsqrt %18 : vector<16x1xf32>
    %20 = vector.broadcast %19 : vector<16x1xf32> to vector<16x128xf32>
    %21 = arith.mulf %11, %20 : vector<16x128xf32>
    %22 = arith.truncf %21 : vector<16x128xf32> to vector<16x128xbf16>
    %c0_6 = arith.constant 0 : index
    %c0_7 = arith.constant 0 : index
    %23 = vector.load %arg2[%c0_6, %c0_7] : memref<128x128xbf16, #tpu.memory_space<vmem>>, vector<128x128xbf16>
    %cst_8 = arith.constant dense<0.000000e+00> : vector<16x128xf32>
    %24 = tpu.matmul %22, %23, %cst_8 {dimension_numbers = #tpu.dot_dimension_numbers<[1], [0], [0], [1], [0, 0, 1, 1], [], []>} : vector<16x128xbf16>, vector<128x128xbf16>, vector<16x128xf32> -> vector<16x128xf32>
    %c0_9 = arith.constant 0 : index
    %c0_10 = arith.constant 0 : index
    %25 = vector.load %arg3[%c0_9, %c0_10] : memref<1x128xf32, #tpu.memory_space<vmem>>, vector<1x128xf32>
    %26 = vector.broadcast %25 : vector<1x128xf32> to vector<16x128xf32>
    %27 = arith.addf %24, %26 : vector<16x128xf32>
    %c0_11 = arith.constant 0 : index
    %c0_12 = arith.constant 0 : index
    %28 = vector.load %arg4[%c0_11, %c0_12] : memref<16x128xf32, #tpu.memory_space<vmem>>, vector<16x128xf32>
    tpu.vector_store %arg4[%c0_11, %c0_12], %27 {strides = array<i32>} : memref<16x128xf32, #tpu.memory_space<vmem>>, vector<16x128xf32>,
    return
  }
  func.func @transform_0(%arg0: i32) -> (i32, i32) {
    %c0_i32 = arith.constant 0 : i32
    %c0_i32_0 = arith.constant 0 : i32
    return %arg0, %c0_i32 : i32, i32
  }
  func.func @transform_1(%arg0: i32) -> (i32, i32) {
    %c0_i32 = arith.constant 0 : i32
    %c0_i32_0 = arith.constant 0 : i32
    %c0_i32_1 = arith.constant 0 : i32
    return %c0_i32, %c0_i32_0 : i32, i32
  }
  func.func @transform_2(%arg0: i32) -> (i32, i32) {
    %c0_i32 = arith.constant 0 : i32
    %c0_i32_0 = arith.constant 0 : i32
    %c0_i32_1 = arith.constant 0 : i32
    return %c0_i32, %c0_i32_0 : i32, i32
  }
  func.func @transform_3(%arg0: i32) -> (i32, i32) {
    %c0_i32 = arith.constant 0 : i32
    %c0_i32_0 = arith.constant 0 : i32
    return %arg0, %c0_i32 : i32, i32
  }
}

</mosaic_0001>

<llo_original>
// kernel: tpu_custom_call.1
$region0: #{tpu_custom_call.1}
  #allocation0 [shape = 'u32[]', space=smem, size = 0x4, offset = 0x4, fixed_abs, tag = 'smem constant byte address 0x4 - core index']
  #allocation1 [shape = 'u32[144,128]{1,0:T(1,128)}', space=vmem, size = 0x12000, scoped, tag = 'internal scratch']
  %s0 = inlined_call_operand.hbm [shape: f32[16,128], index: 0, kind: input, shape index: {}]
  %s1 = inlined_call_operand.hbm [shape: bf16[128,128], index: 1, kind: input, shape index: {}]
  %s2 = inlined_call_operand.vmem [shape: f32[1,128], index: 2, kind: input, shape index: {}]
  %s3 = inlined_call_operand.hbm [shape: f32[16,128], index: 3, kind: output, shape index: {}]
  %s4 = sld [smem:[#allocation0]]
  $region30: #{tpu_custom_call.1} parent=0
    _
  %s6 = ssub.s32 1, %s4
  %s7 = scalar_select 0, %s6, %s4
  $region1: #{tpu_custom_call.1} parent=0
    #allocation2 [shape = 'u8[8192]{0}', space=vmem, size = 0x2000, scoped, tag = 'input window, operand 0, single buffered']
    #allocation3 [shape = 's32[1]{0}', space=sflag, size = 0x4, scoped, tag = 'scoped memory for tpu_custom_call.1']
    #allocation4 [shape = 's32[1]{0}', space=sflag, size = 0x4, scoped, tag = 'scoped memory for tpu_custom_call.1']
    #allocation5 [shape = 'u8[32768]{0}', space=vmem, size = 0x8000, scoped, tag = 'input window, operand 1, single buffered']
    #allocation6 [shape = 's32[1]{0}', space=sflag, size = 0x4, scoped, tag = 'scoped memory for tpu_custom_call.1']
    #allocation7 [shape = 'u8[8192]{0}', space=vmem, size = 0x2000, scoped, tag = 'output window, operand 0, single buffered']
    %8 = vsyncpa [#allocation3], 0
    %9 = vsyncpa [#allocation6], 0
    %10 = vsyncpa [#allocation4], 0
    // Predicated region
    $region2: #{tpu_custom_call.1} parent=1 // pred_check
      _
    $region3: #{tpu_custom_call.1} parent=1 // pred_check_branch
      %12 = sbr.rel (0) target = $region5
    $region4: #{tpu_custom_call.1} parent=1 // pred_region
      %s14 = ssub.s32 256, 256
      %15 = vsyncadd [#allocation3], %s14
      %s16 = sshll.u32 [#allocation2], 4
      %s17 = int_to_ptr.vmem [resolvable:$true] %s16
      %22 = dma.hbm_to_vmem [thread:$0]  %s0, 256, %s17, [#allocation3], 128, 128, 8
    $region5: #{tpu_custom_call.1} parent=1 // pred_fallthru
      _
    // Predicated region
    $region6: #{tpu_custom_call.1} parent=1 // pred_check
      _
    $region7: #{tpu_custom_call.1} parent=1 // pred_check_branch
      %24 = sbr.rel (0) target = $region9
    $region8: #{tpu_custom_call.1} parent=1 // pred_region
      %s26 = ssub.s32 1024, 1024
      %27 = vsyncadd [#allocation6], %s26
      %s28 = sshll.u32 [#allocation5], 4
      %s29 = int_to_ptr.vmem [resolvable:$true] %s28
      %34 = dma.hbm_to_vmem [thread:$0]  %s1, 1024, %s29, [#allocation6], 64, 64, 4
    $region9: #{tpu_custom_call.1} parent=1 // pred_fallthru
      _
    // Predicated region
    $region10: #{tpu_custom_call.1} parent=1 // pred_check
      _
    $region11: #{tpu_custom_call.1} parent=1 // pred_check_branch
      %36 = sbr.rel (0) target = $region13
    $region12: #{tpu_custom_call.1} parent=1 // pred_region
      _
    $region13: #{tpu_custom_call.1} parent=1 // pred_fallthru
      _
    // Predicated region
    $region14: #{tpu_custom_call.1} parent=1 // pred_check
      _
    $region15: #{tpu_custom_call.1} parent=1 // pred_check_branch
      %38 = sbr.rel (0) target = $region17
    $region16: #{tpu_custom_call.1} parent=1 // pred_region
      %39 = dma.done [#allocation3], 256
    $region17: #{tpu_custom_call.1} parent=1 // pred_fallthru
      _
    // Predicated region
    $region18: #{tpu_custom_call.1} parent=1 // pred_check
      _
    $region19: #{tpu_custom_call.1} parent=1 // pred_check_branch
      %41 = sbr.rel (0) target = $region21
    $region20: #{tpu_custom_call.1} parent=1 // pred_region
      %42 = dma.done [#allocation6], 1024
    $region21: #{tpu_custom_call.1} parent=1 // pred_fallthru
      _
    %v44 = vld [vmem:[#allocation2] sm:$0xff]
    %v45 = vld [vmem:[#allocation2 + $0x8] sm:$0xff]
    %46 = vadd.xlane.f32.xlu0 %v44
    %v47 = vpop.xlane.xlu0 %46
    %48 = vadd.xlane.f32.xlu0 %v45
    %v49 = vpop.xlane.xlu0 %48
    %v50 = vmul.f32 %v47, 0.03125
    %v51 = vmul.f32 %v49, 0.03125
    %v52 = vsub.f32 %v44, %v50
    %v53 = vsub.f32 %v45, %v51
    %v54 = vlaneseq
    %v55 = vand.u32 %v54, 127
    %vm56 = vcmp.lt.s32.totalorder %v55, 32
    %v57 = vsel %vm56, %v52, 0.0
    %v58 = vsel %vm56, %v53, 0.0
    %v59 = vmul.f32 %v57, %v57
    %v60 = vmul.f32 %v58, %v58
    %61 = vadd.xlane.f32.xlu0 %v59
    %v62 = vpop.xlane.xlu0 %61
    %63 = vadd.xlane.f32.xlu0 %v60
    %v64 = vpop.xlane.xlu0 %63
    %v65 = vmul.f32 %v62, 0.03125
    %v66 = vmul.f32 %v64, 0.03125
    %v67 = vadd.f32 %v65, 1e-05
    %v68 = vadd.f32 %v66, 1e-05
    %v69 = vrsqrt.pop %v67
    %v70 = vrsqrt.pop %v68
    %v71 = vmul.f32 %v57, %v69
    %v72 = vmul.f32 %v58, %v70
    %v73 = vpack.c.bf16 %v72, %v71
    %v74 = vld [vmem:[#allocation5] sm:$0xf]
    %v75 = vld [vmem:[#allocation5 + $0x4] sm:$0xf]
    %v76 = vld [vmem:[#allocation5 + $0x8] sm:$0xf]
    %v77 = vld [vmem:[#allocation5 + $0xc] sm:$0xf]
    %v78 = vld [vmem:[#allocation5 + $0x10] sm:$0xf]
    %v79 = vld [vmem:[#allocation5 + $0x14] sm:$0xf]
    %v80 = vld [vmem:[#allocation5 + $0x18] sm:$0xf]
    %v81 = vld [vmem:[#allocation5 + $0x1c] sm:$0xf]
    %v82 = vld [vmem:[#allocation5 + $0x20] sm:$0xf]
    %v83 = vld [vmem:[#allocation5 + $0x24] sm:$0xf]
    %v84 = vld [vmem:[#allocation5 + $0x28] sm:$0xf]
    %v85 = vld [vmem:[#allocation5 + $0x2c] sm:$0xf]
    %v86 = vld [vmem:[#allocation5 + $0x30] sm:$0xf]
    %v87 = vld [vmem:[#allocation5 + $0x34] sm:$0xf]
    %v88 = vld [vmem:[#allocation5 + $0x38] sm:$0xf]
    %v89 = vld [vmem:[#allocation5 + $0x3c] sm:$0xf]
    %v90 = vld [vmem:[%s2] sm:$0x1]
    %v92 = vlaneseq
    %v93 = vshrl.u32 %v92, 7
    %v94 = vsub.s32 0, %v93
    %v95 = vrot.slane %v90, %v94
    %v113 = vunpack.c.l.b16 %v74
    %v114 = vunpack.c.l.b16 %v75
    %v115 = vunpack.c.l.b16 %v76
    %v116 = vunpack.c.l.b16 %v77
    %v117 = vunpack.c.l.b16 %v78
    %v118 = vunpack.c.l.b16 %v79
    %v119 = vunpack.c.l.b16 %v80
    %v120 = vunpack.c.l.b16 %v81
    %v121 = vunpack.c.l.b16 %v82
    %v122 = vunpack.c.l.b16 %v83
    %v123 = vunpack.c.l.b16 %v84
    %v124 = vunpack.c.l.b16 %v85
    %v125 = vunpack.c.l.b16 %v86
    %v126 = vunpack.c.l.b16 %v87
    %v127 = vunpack.c.l.b16 %v88
    %v128 = vunpack.c.l.b16 %v89
    %v129 = vpack.c.b16 %v114, %v113
    %v130 = vpack.c.b16 %v116, %v115
    %v131 = vpack.c.b16 %v118, %v117
    %v132 = vpack.c.b16 %v120, %v119
    %v133 = vpack.c.b16 %v122, %v121
    %v134 = vpack.c.b16 %v124, %v123
    %v135 = vpack.c.b16 %v126, %v125
    %v136 = vpack.c.b16 %v128, %v127
    %145 = vmatprep.subr.bf16.mxu0 0
    %146 = vmatpush1.bf16.msra.mxu0 %v136
    %147 = vmatprep.subr.bf16.mxu0 0
    %148 = vmatpush1.bf16.msra.mxu0 %v135
    %149 = vmatprep.subr.bf16.mxu0 0
    %150 = vmatpush1.bf16.msra.mxu0 %v134
    %151 = vmatprep.subr.bf16.mxu0 0
    %152 = vmatpush1.bf16.msra.mxu0 %v133
    %153 = vmatprep.subr.bf16.mxu0 0
    %154 = vmatpush1.bf16.msra.mxu0 %v132
    %155 = vmatprep.subr.bf16.mxu0 0
    %156 = vmatpush1.bf16.msra.mxu0 %v131
    %157 = vmatprep.subr.bf16.mxu0 0
    %158 = vmatpush1.bf16.msra.mxu0 %v130
    %159 = vmatprep.subr.bf16.mxu0 0
    %160 = vmatpush1.bf16.msra.mxu0 %v129
    %161 = vmatprep.subr.bf16.mxu0 0
    %162 = vmatpush2.bf16.msra.mxu0 0
    %163 = vmatprep.subr.bf16.mxu0 0
    %164 = vmatpush2.bf16.msra.mxu0 0
    %165 = vmatprep.subr.bf16.mxu0 0
    %166 = vmatpush2.bf16.msra.mxu0 0
    %167 = vmatprep.subr.bf16.mxu0 0
    %168 = vmatpush2.bf16.msra.mxu0 0
    %169 = vmatprep.subr.bf16.mxu0 0
    %170 = vmatpush2.bf16.msra.mxu0 0
    %171 = vmatprep.subr.bf16.mxu0 0
    %172 = vmatpush2.bf16.msra.mxu0 0
    %173 = vmatprep.subr.bf16.mxu0 0
    %174 = vmatpush2.bf16.msra.mxu0 0
    %175 = vmatprep.subr.bf16.mxu0 0
    %176 = vmatpush2.bf16.msra.mxu0 0
    %177 = vmatprep.mubr.bf16.mxu0 0
    %178 = vmatmul.mubr.bf16.gmra.mxu0 %v73
    %v179 = vpop.f32.mrf.mxu0
    %v180 = vadd.f32 %v95, %v179
    %v181 = vpop.f32.mrf.mxu0
    %v182 = vpop.f32.mrf.mxu0
    %v183 = vadd.f32 %v95, %v182
    %v184 = vpop.f32.mrf.mxu0
    %185 = vdwg.mxu0
    %186 = vst [vmem:[#allocation7] sm:$0xff] %v180
    %187 = vst [vmem:[#allocation7 + $0x8] sm:$0xff] %v183
    // Predicated region
    $region22: #{tpu_custom_call.1} parent=1 // pred_check
      _
    $region23: #{tpu_custom_call.1} parent=1 // pred_check_branch
      %189 = sbr.rel (0) target = $region25
    $region24: #{tpu_custom_call.1} parent=1 // pred_region
      %s191 = ssub.s32 256, 256
      %192 = vsyncadd [#allocation4], %s191
      %s193 = sshll.u32 [#allocation7], 4
      %s194 = int_to_ptr.vmem [resolvable:$true] %s193
      %199 = dma.vmem_to_hbm [thread:$0]  %s194, 256, %s3, [#allocation4], 128, 128, 8
    $region25: #{tpu_custom_call.1} parent=1 // pred_fallthru
      _
    // Predicated region
    $region26: #{tpu_custom_call.1} parent=1 // pred_check
      _
    $region27: #{tpu_custom_call.1} parent=1 // pred_check_branch
      %201 = sbr.rel (0) target = $region29
    $region28: #{tpu_custom_call.1} parent=1 // pred_region
      %202 = dma.done [#allocation4], 256
    $region29: #{tpu_custom_call.1} parent=1 // pred_fallthru
      _
    %203 = vsyncpa [#allocation3], 1
    %204 = vsyncpa [#allocation6], 1
    %205 = vsyncpa [#allocation4], 1

</llo_original>
